<compile_context>
chip_gen: v6e
topology: v6e:2x2x1
jax: 0.10.0
libtpu: 0.0.40
codegen_flags: <defaults>
</compile_context>

<pallas_src>
import functools
import math

import jax
import jax.numpy as jnp
from jax.experimental import pallas as pl
from jax.experimental.pallas import tpu as pltpu


def _ceil_div(a, b):
    return -(-a // b)


def _round_up(a, m):
    return _ceil_div(a, m) * m


def _custom_pooling_kernel(const_ref, x_ref, o_ref, *, avg_const):
    """One grid step: rows tile of shape (TR, HW) -> (TR, 1) pooled scores.

    const_ref: SMEM (2,) f32  — [const, 1/const] with const = r_0 + exp(beta)
    x_ref:     VMEM (TR, HW)  — flattened spatial dims per (batch, class) row
    o_ref:     VMEM (TR, 1)   — pooled score per row
    """
    c = const_ref[0]
    inv_c = const_ref[1]

    xf = x_ref[...].astype(jnp.float32)                    # in-kernel upcast (bf16 ok)
    m = c * xf                                             # scale by const (VPU)
    mx = jnp.max(m, axis=-1, keepdims=True)                # row max (XLU)
    s = jnp.sum(jnp.exp(m - mx), axis=-1, keepdims=True)   # stable exp-sum (EUP + XLU)
    lse = mx + jnp.log(s)                                  # logsumexp over (h, w)
    o_ref[...] = (avg_const + lse) * inv_c                 # hoisted reciprocal


def _choose_row_tile(R, HW, itemsize):
    """Largest row tile (multiple of 8, <= 2048) fitting a conservative VMEM budget."""
    # Per-row working bytes: input block x2 (double buffer, native dtype)
    # + ~3 block-sized f32 temporaries (upcast / scaled / exp)
    # + lane-padded (row_tile, 1) output blocks x2.
    per_row_bytes = HW * (2 * itemsize + 3 * 4) + 2 * 128 * 4
    budget = 20 * 1024 * 1024          # fits v7x (64 MiB VMEM) and v5e/v6e (128 MiB)
    rt = (budget // per_row_bytes) // 8 * 8
    rt = max(8, min(2048, rt))
    # Prefer >= 2 grid steps so v7x's two TensorCores both get work.
    if rt >= R and R >= 16:
        rt = max(8, _round_up(_ceil_div(R, 2), 8))
    # Never exceed the padded row count.
    rt = min(rt, max(8, _round_up(R, 8)))
    return rt


def custom_pooling(x, beta, r_0=0.0, *, row_tile=None,
                   vmem_limit_bytes=48 * 1024 * 1024):
    """Pallas implementation of CustomPooling.forward with mode=None.

    x:    [bs, K, h, w] array (NCHW), any float dtype (kept native; upcast in-kernel)
    beta: (1,) float parameter
    returns: [bs, K] float32
    """
    bs, K, h, w = x.shape
    R, HW = bs * K, h * w

    x2d = x.reshape(R, HW)                                  # no dtype cast here

    itemsize = jnp.dtype(x.dtype).itemsize
    if row_tile is None:
        row_tile = _choose_row_tile(R, HW, itemsize)
    else:
        row_tile = max(8, _round_up(int(row_tile), 8))
        row_tile = min(row_tile, max(8, _round_up(R, 8)))

    num_tiles = _ceil_div(R, row_tile)
    R_pad = num_tiles * row_tile
    if R_pad != R:
        x2d = jnp.pad(x2d, ((0, R_pad - R), (0, 0)))        # zero rows: computed, discarded

    beta_f32 = beta.astype(jnp.float32).reshape(())
    const = r_0 + jnp.exp(beta_f32)                         # scalar
    consts = jnp.stack([const, 1.0 / const]).astype(jnp.float32)   # (2,) [c, 1/c]
    avg_const = math.log(1.0 / (w * h))                     # compile-time constant

    out = pl.pallas_call(
        functools.partial(_custom_pooling_kernel, avg_const=avg_const),
        out_shape=jax.ShapeDtypeStruct((R_pad, 1), jnp.float32),
        grid=(num_tiles,),
        in_specs=[
            pl.BlockSpec(memory_space=pltpu.MemorySpace.SMEM),   # [const, 1/const]
            pl.BlockSpec((row_tile, HW), lambda i: (i, 0)),      # rows tile
        ],
        out_specs=pl.BlockSpec((row_tile, 1), lambda i: (i, 0)),
        compiler_params=pltpu.CompilerParams(
            dimension_semantics=("parallel",),
            vmem_limit_bytes=vmem_limit_bytes,
        ),
    )(consts, x2d)

    return out[:R, 0].reshape(bs, K)


def _reference(x, beta, r_0=0.0):
    """Pure-JAX reference of the PyTorch forward (mode=None)."""
    bs, K, h, w = x.shape
    const = r_0 + jnp.exp(beta.astype(jnp.float32))         # (1,)
    avg_const = math.log(1.0 / (w * h))
    mod = const * x.astype(jnp.float32)
    lse = jax.scipy.special.logsumexp(mod, axis=(-1, -2))   # [bs, K]
    return (avg_const + lse) / const


if __name__ == "__main__":
    key = jax.random.PRNGKey(0)
    k_beta, k_x, k_x2 = jax.random.split(key, 3)

    # Deterministic parameter init, matching nn.init.uniform_(torch.empty(1)) ~ U(0, 1).
    beta = jax.random.uniform(k_beta, (1,), dtype=jnp.float32)

    # Primary small input consistent with forward: [bs x K x h x w]
    x = jax.random.normal(k_x, (2, 4, 16, 16), dtype=jnp.float32)
    out = jax.block_until_ready(custom_pooling(x, beta, r_0=0.0))
    ref = jax.block_until_ready(_reference(x, beta, r_0=0.0))
    assert out.shape == (2, 4)
    assert jnp.allclose(out, ref, atol=1e-5, rtol=1e-5), (out, ref)

    # Second shape exercising the ragged-row (padding) and multi-step-grid paths.
    x2 = jax.random.normal(k_x2, (4, 10, 16, 16), dtype=jnp.float32)
    out2 = jax.block_until_ready(custom_pooling(x2, beta, r_0=0.0))
    ref2 = jax.block_until_ready(_reference(x2, beta, r_0=0.0))
    assert out2.shape == (4, 10)
    assert jnp.allclose(out2, ref2, atol=1e-5, rtol=1e-5), (out2, ref2)

    print("KERNEL_OK")
</pallas_src>

<mosaic_0001>
module attributes {stable_mosaic.version = 11 : i64} {
  func.func @_custom_pooling_kernel(%arg0: i32, %arg1: memref<2xf32, #tpu.memory_space<smem>>, %arg2: memref<8x256xf32, #tpu.memory_space<vmem>>, %arg3: memref<8x1xf32, #tpu.memory_space<vmem>>) attributes {dimension_semantics = [#tpu.dimension_semantics<parallel>], iteration_bounds = array<i64: 1>, scalar_prefetch = 0 : i64, scratch_operands = 0 : i64, tpu.core_type = #tpu.core_type<tc>, window_params = [{transform_indices = @transform_0, window_bounds = array<i64: 2>}, {transform_indices = @transform_1, window_bounds = array<i64: 8, 256>}, {transform_indices = @transform_2, window_bounds = array<i64: 8, 1>}]} {
    %c0 = arith.constant 0 : index
    %0 = memref.load %arg1[%c0] : memref<2xf32, #tpu.memory_space<smem>>
    %c1 = arith.constant 1 : index
    %1 = memref.load %arg1[%c1] : memref<2xf32, #tpu.memory_space<smem>>
    %c0_0 = arith.constant 0 : index
    %c0_1 = arith.constant 0 : index
    %2 = vector.load %arg2[%c0_0, %c0_1] : memref<8x256xf32, #tpu.memory_space<vmem>>, vector<8x256xf32>
    %3 = vector.broadcast %0 : f32 to vector<8x256xf32>
    %4 = arith.mulf %3, %2 : vector<8x256xf32>
    %cst = arith.constant dense<0xFF800000> : vector<8xf32>
    %5 = vector.multi_reduction <maximumf>, %4, %cst [1] : vector<8x256xf32> to vector<8xf32>
    %6 = vector.shape_cast %5 : vector<8xf32> to vector<8x1xf32>
    %7 = vector.broadcast %6 : vector<8x1xf32> to vector<8x256xf32>
    %8 = arith.subf %4, %7 : vector<8x256xf32>
    %9 = math.exp %8 : vector<8x256xf32>
    %cst_2 = arith.constant dense<0.000000e+00> : vector<8xf32>
    %10 = vector.multi_reduction <add>, %9, %cst_2 [1] : vector<8x256xf32> to vector<8xf32>
    %11 = vector.shape_cast %10 : vector<8xf32> to vector<8x1xf32>
    %12 = math.log %11 : vector<8x1xf32>
    %13 = arith.addf %6, %12 : vector<8x1xf32>
    %cst_3 = arith.constant -5.54517746 : f32
    %14 = vector.broadcast %cst_3 : f32 to vector<8x1xf32>
    %15 = arith.addf %14, %13 : vector<8x1xf32>
    %16 = vector.broadcast %1 : f32 to vector<8x1xf32>
    %17 = arith.mulf %15, %16 : vector<8x1xf32>
    %c0_4 = arith.constant 0 : index
    %c0_5 = arith.constant 0 : index
    %18 = vector.load %arg3[%c0_4, %c0_5] : memref<8x1xf32, #tpu.memory_space<vmem>>, vector<8x1xf32>
    tpu.vector_store %arg3[%c0_4, %c0_5], %17 {strides = array<i32>} : memref<8x1xf32, #tpu.memory_space<vmem>>, vector<8x1xf32>,
    return
  }
  func.func @transform_0(%arg0: i32) -> i32 {
    %c0_i32 = arith.constant 0 : i32
    %c0_i32_0 = arith.constant 0 : i32
    return %c0_i32 : i32
  }
  func.func @transform_1(%arg0: i32) -> (i32, i32) {
    %c0_i32 = arith.constant 0 : i32
    %c0_i32_0 = arith.constant 0 : i32
    return %arg0, %c0_i32 : i32, i32
  }
  func.func @transform_2(%arg0: i32) -> (i32, i32) {
    %c0_i32 = arith.constant 0 : i32
    %c0_i32_0 = arith.constant 0 : i32
    return %arg0, %c0_i32 : i32, i32
  }
}

</mosaic_0001>

<llo_original>
// kernel: tpu_custom_call.1
$region0: #{tpu_custom_call.1}
  #allocation0 [shape = 'u32[]', space=smem, size = 0x4, offset = 0x4, fixed_abs, tag = 'smem constant byte address 0x4 - core index']
  #allocation1 [shape = 'u32[144,128]{1,0:T(1,128)}', space=vmem, size = 0x12000, scoped, tag = 'internal scratch']
  %s0 = inlined_call_operand.hbm [shape: f32[2], index: 0, kind: input, shape index: {}]
  %s1 = inlined_call_operand.hbm [shape: f32[8,256], index: 1, kind: input, shape index: {}]
  %s2 = inlined_call_operand.vmem [shape: f32[8,1], index: 2, kind: output, shape index: {}]
  %s3 = sld [smem:[#allocation0]]
  $region26: #{tpu_custom_call.1} parent=0
    _
  %s5 = ssub.s32 1, %s3
  %s6 = scalar_select 0, %s5, %s3
  $region1: #{tpu_custom_call.1} parent=0
    #allocation2 [shape = 'u8[512]{0}', space=smem, size = 0x200, scoped, tag = 'input window, operand 0, single buffered']
    #allocation3 [shape = 's32[1]{0}', space=sflag, size = 0x4, scoped, tag = 'scoped memory for tpu_custom_call.1']
    #allocation4 [shape = 's32[1]{0}', space=sflag, size = 0x4, scoped, tag = 'scoped memory for tpu_custom_call.1']
    #allocation5 [shape = 'u8[8192]{0}', space=vmem, size = 0x2000, scoped, tag = 'input window, operand 1, single buffered']
    %7 = vsyncpa [#allocation4], 0
    %8 = vsyncpa [#allocation3], 0
    // Predicated region
    $region2: #{tpu_custom_call.1} parent=1 // pred_check
      _
    $region3: #{tpu_custom_call.1} parent=1 // pred_check_branch
      %10 = sbr.rel (0) target = $region5
    $region4: #{tpu_custom_call.1} parent=1 // pred_region
      %s12 = ssub.s32 16, 16
      %13 = vsyncadd [#allocation4], %s12
      %16 = dma.hbm_to_smem %s0, 16, [#allocation2], [#allocation4]
    $region5: #{tpu_custom_call.1} parent=1 // pred_fallthru
      _
    // Predicated region
    $region6: #{tpu_custom_call.1} parent=1 // pred_check
      _
    $region7: #{tpu_custom_call.1} parent=1 // pred_check_branch
      %18 = sbr.rel (0) target = $region9
    $region8: #{tpu_custom_call.1} parent=1 // pred_region
      %s20 = ssub.s32 256, 256
      %21 = vsyncadd [#allocation3], %s20
      %s23 = sshll.u32 [#allocation5], 4
      %s24 = int_to_ptr.vmem [resolvable:$true] %s23
      %26 = dma.hbm_to_vmem [thread:$0]  %s1, 256, %s24, [#allocation3]
    $region9: #{tpu_custom_call.1} parent=1 // pred_fallthru
      _
    // Predicated region
    $region10: #{tpu_custom_call.1} parent=1 // pred_check
      _
    $region11: #{tpu_custom_call.1} parent=1 // pred_check_branch
      %28 = sbr.rel (0) target = $region13
    $region12: #{tpu_custom_call.1} parent=1 // pred_region
      %29 = dma.done [#allocation4], 16
    $region13: #{tpu_custom_call.1} parent=1 // pred_fallthru
      _
    // Predicated region
    $region14: #{tpu_custom_call.1} parent=1 // pred_check
      _
    $region15: #{tpu_custom_call.1} parent=1 // pred_check_branch
      %31 = sbr.rel (0) target = $region17
    $region16: #{tpu_custom_call.1} parent=1 // pred_region
      %32 = dma.done [#allocation3], 256
    $region17: #{tpu_custom_call.1} parent=1 // pred_fallthru
      _
    %33 = sfence
    %s34 = sld [smem:[#allocation2]]
    %s35 = sld [smem:[#allocation2 + $0x1]]
    %v36 = vld [vmem:[#allocation5] sm:$0xff]
    %v37 = vld [vmem:[#allocation5 + $0x8] sm:$0xff]
    %v38 = vstv %s34
    %v39 = vmul.f32 %v38, %v36
    %v40 = vmul.f32 %v38, %v37
    %v41 = vmax.f32 %v39, %v40
    %42 = vmax.xlane.f32.xlu0 %v41
    %v43 = vpop.xlane.xlu0 %42
    %v44 = vsub.f32 %v39, %v43
    %v45 = vsub.f32 %v40, %v43
    %v46 = vmul.f32 %v44, 1.442695
    %v47 = vpow.pop %v46
    %v48 = vmul.f32 %v45, 1.442695
    %v49 = vpow.pop %v48
    %v50 = vadd.f32 %v47, %v49
    %51 = vadd.xlane.f32.xlu0 %v50
    %v52 = vpop.xlane.xlu0 %51
    %v53 = vlog2.pop %v52
    %v54 = vmul.f32 %v53, 0.6931472
    %v55 = vadd.f32 %v43, %v54
    %v56 = vadd.f32 %v55, -5.5451775
    %v57 = vstv %s35
    %v58 = vmul.f32 %v56, %v57
    %vm59 = vcmask 7168
    %60 = vst.msk [vmem:[%s2] sm:$0xff] %vm59, %v58
    // Predicated region
    $region18: #{tpu_custom_call.1} parent=1 // pred_check
      _
    $region19: #{tpu_custom_call.1} parent=1 // pred_check_branch
      %62 = sbr.rel (0) target = $region21
    $region20: #{tpu_custom_call.1} parent=1 // pred_region
      _
    $region21: #{tpu_custom_call.1} parent=1 // pred_fallthru
      _
    // Predicated region
    $region22: #{tpu_custom_call.1} parent=1 // pred_check
      _
    $region23: #{tpu_custom_call.1} parent=1 // pred_check_branch
      %64 = sbr.rel (0) target = $region25
    $region24: #{tpu_custom_call.1} parent=1 // pred_region
      _
    $region25: #{tpu_custom_call.1} parent=1 // pred_fallthru
      _
    %65 = vsyncpa [#allocation3], 1
    %66 = vsyncpa [#allocation4], 1

</llo_original>
